<compile_context>
chip_gen: v6e
topology: v6e:2x2x1
jax: 0.10.0
libtpu: 0.0.40
codegen_flags: <defaults>
</compile_context>

<pallas_src>
import jax
import jax.numpy as jnp
from jax import lax
from jax.experimental import pallas as pl
from jax.experimental.pallas import tpu as pltpu


def bidaf_kernel(lens_ref, s1_ref, s2_ref, w_ref, u_ref, h_ref):
    s1 = s1_ref[...]                              # (Bb, t1, D) f32
    s2 = s2_ref[...]                              # (Bb, t2, D) f32
    w1 = w_ref[0:1, :]                            # (1, D) weight for the s1 part
    w2 = w_ref[1:2, :]                            # (1, D) weight for the s2 part
    w3 = w_ref[2:3, :]                            # (1, D) weight for the s1*s2 part

    _, t1, _ = s1.shape
    t2 = s2.shape[1]
    neg_inf = jnp.float32(-jnp.inf)

    l1 = lens_ref[:, :, 0:1]                      # (Bb, 1, 1) int32
    l2 = lens_ref[:, :, 1:2]                      # (Bb, 1, 1) int32

    # Row-constant term <s1_i, w1>: softmax over t2 is invariant to it, so keep it
    # off the (Bb,t1,t2) map and only add it to the per-row max for the h path.
    a_col = jnp.sum(s1 * w1, axis=-1, keepdims=True)            # (Bb, t1, 1)

    # s'[b,i,j] = <s1_i*w3 + w2, s2_j>   (folds the <w2, s2_j> column term)
    # bf16 operands for the MXU, f32 accumulation.
    s2_bf = s2.astype(jnp.bfloat16)
    lhs = (s1 * w3 + w2).astype(jnp.bfloat16)                    # (Bb, t1, D)
    s = jnp.einsum("bid,bjd->bij", lhs, s2_bf,
                   preferred_element_type=jnp.float32)           # (Bb, t1, t2)

    # Column mask only (j < l2) on the big map; row mask handled on small tensors.
    col_ids = lax.broadcasted_iota(jnp.int32, (1, 1, t2), 2)
    s = jnp.where(col_ids < l2, s, neg_inf)
    row_ids = lax.broadcasted_iota(jnp.int32, (1, t1, 1), 1)
    row_valid = row_ids < l1                                     # (Bb, t1, 1) bool

    # softmax over t2, normalized AFTER the p @ s2 matmul (exact division on a
    # (Bb,t1,1) tensor). Rows with i >= l1 or an empty column range get scale = 0,
    # reproducing torch's NaN->0 behavior.
    row_max = jnp.max(s, axis=-1, keepdims=True)                 # (Bb, t1, 1)
    safe_max = jnp.where(row_max == neg_inf, 0.0, row_max)
    p = jnp.exp(s - safe_max)                                    # masked cols -> 0
    denom = jnp.sum(p, axis=-1, keepdims=True)                   # (Bb, t1, 1)
    scale = jnp.where(row_valid & (denom > 0.0), 1.0 / denom, 0.0)
    u = jnp.einsum("bij,bjd->bid", p.astype(jnp.bfloat16), s2_bf,
                   preferred_element_type=jnp.float32) * scale   # (Bb, t1, D)
    u_ref[...] = u.astype(u_ref.dtype)

    # h path: softmax over t1 of the full per-row max (row constant restored,
    # invalid rows forced to -inf), then weighted sum of s1 -> one (Bb, D) row.
    m_row = jnp.where(row_valid, row_max + a_col, neg_inf)       # (Bb, t1, 1)
    m_max = jnp.max(m_row, axis=1, keepdims=True)                # (Bb, 1, 1)
    safe_m = jnp.where(m_max == neg_inf, 0.0, m_max)
    q = jnp.exp(m_row - safe_m)                                  # (Bb, t1, 1)
    qsum = jnp.sum(q, axis=1, keepdims=True)                     # (Bb, 1, 1)
    h = jnp.sum(q * s1, axis=1)                                  # (Bb, D)
    h_ref[...] = ((h / qsum[:, 0, :])[None]).astype(h_ref.dtype)  # (1, Bb, D)


def bidaf_attn(s1, l1, s2, l2, w, get_h=False, block_b=8, pad_lanes=None):
    """w: (3, D) = nn.Linear(3D, 1, bias=False).weight reshaped as [w_s1; w_s2; w_prod]."""
    B, t1, D = s1.shape
    t2 = s2.shape[1]
    orig_D = D

    # ---- optional lane-dense output: zero-pad D to a multiple of 128 -----------
    # Padded w/s1/s2 columns are zero, so the similarity, u and h are unchanged and
    # the padded output columns are identically zero (sliced off below).
    Dp = -(-D // 128) * 128
    if pad_lanes is None:
        pad_lanes = (D % 128 != 0) and (Dp <= int(D * 1.34))
    if pad_lanes and D % 128 != 0:
        dpad = Dp - D
        s1 = jnp.pad(s1, ((0, 0), (0, 0), (0, dpad)))
        s2 = jnp.pad(s2, ((0, 0), (0, 0), (0, dpad)))
        w = jnp.pad(w, ((0, 0), (0, dpad)))
        D = Dp

    # ---- per-generation VMEM budget & Bb auto-sizing ----------------------------
    try:
        phys_vmem = int(pltpu.get_tpu_info().vmem_capacity_bytes)
    except Exception:
        phys_vmem = 128 << 20
    budget = (phys_vmem * 3) // 4        # ~48 MiB on v7x, ~96 MiB on v5e/v6e

    def footprint(bb):
        io = 4 * bb * (2 * t1 * D + t2 * D + D) + 8 * bb + 12 * D   # blocks (f32)
        interm = bb * t1 * t2 * (4 + 4 + 2) + 4 * bb * t1 * D        # s, p, p_bf16, u
        return 2 * io + interm + (2 << 20)                           # dbl-buf + slack

    Bb = max(1, min(B, block_b))
    while Bb > 1 and footprint(Bb) > budget:
        Bb = (Bb + 1) // 2
    nb = -(-B // Bb)
    if nb < 2 and B >= 2:                # keep >= 2 grid steps (feeds both v7x TCs)
        Bb = -(-B // 2)
        nb = -(-B // Bb)
    Bp = nb * Bb
    if Bp != B:
        pad = Bp - B
        s1 = jnp.pad(s1, ((0, pad), (0, 0), (0, 0)))
        s2 = jnp.pad(s2, ((0, pad), (0, 0), (0, 0)))
        l1 = jnp.pad(l1, (0, pad))
        l2 = jnp.pad(l2, (0, pad))
    lens = jnp.stack([l1.astype(jnp.int32), l2.astype(jnp.int32)],
                     axis=-1).reshape(Bp, 1, 2)

    vmem_limit = int(min(budget, max(32 << 20, 2 * footprint(Bb))))

    u_pad, h_pad = pl.pallas_call(
        bidaf_kernel,
        grid=(nb,),
        in_specs=[
            pl.BlockSpec((Bb, 1, 2), lambda i: (i, 0, 0)),     # lens = [l1, l2]
            pl.BlockSpec((Bb, t1, D), lambda i: (i, 0, 0)),    # s1
            pl.BlockSpec((Bb, t2, D), lambda i: (i, 0, 0)),    # s2
            pl.BlockSpec((3, D), lambda i: (0, 0)),            # w
        ],
        out_specs=[
            pl.BlockSpec((Bb, t1, D), lambda i: (i, 0, 0)),    # u_tile
            pl.BlockSpec((1, Bb, D), lambda i: (i, 0, 0)),     # h rows (un-broadcast)
        ],
        out_shape=(
            jax.ShapeDtypeStruct((Bp, t1, D), jnp.float32),
            jax.ShapeDtypeStruct((nb, Bb, D), jnp.float32),
        ),
        compiler_params=pltpu.CompilerParams(
            dimension_semantics=("parallel",),
            vmem_limit_bytes=vmem_limit,
        ),
    )(lens, s1, s2, w)

    u_tile = u_pad[:B, :, :orig_D]
    if not get_h:
        return u_tile, None
    h = h_pad.reshape(Bp, D)[:B, :orig_D]
    h_tile = jnp.broadcast_to(h[:, None, :], (B, t1, orig_D))
    return u_tile, h_tile


def bidaf_reference(s1, l1, s2, l2, w):
    """Exact-f32 pure-JAX reference mirroring the PyTorch forward (method='original')."""
    B, t1, D = s1.shape
    t2 = s2.shape[1]
    hi = lax.Precision.HIGHEST
    w1, w2, w3 = w[0], w[1], w[2]
    s = (jnp.einsum("bid,d->bi", s1, w1, precision=hi)[:, :, None]
         + jnp.einsum("bjd,d->bj", s2, w2, precision=hi)[:, None, :]
         + jnp.einsum("bid,bjd->bij", s1 * w3, s2, precision=hi))
    mask = ((jnp.arange(t1)[None, :, None] < l1[:, None, None]) &
            (jnp.arange(t2)[None, None, :] < l2[:, None, None]))
    s = jnp.where(mask, s, -jnp.inf)
    a = jax.nn.softmax(s, axis=2)
    a = jnp.where(jnp.isnan(a), 0.0, a)
    u = jnp.einsum("bij,bjd->bid", a, s2, precision=hi)
    b_w = jax.nn.softmax(jnp.max(s, axis=2), axis=-1)
    h = jnp.einsum("bi,bid->bd", b_w, s1, precision=hi)
    h_tile = jnp.broadcast_to(h[:, None, :], (B, t1, D))
    return u, h_tile


if __name__ == "__main__":
    B, T1, T2, D = 2, 16, 8, 32

    key = jax.random.PRNGKey(0)
    k1, k2, k3 = jax.random.split(key, 3)
    s1 = jax.random.normal(k1, (B, T1, D), dtype=jnp.float32)
    s2 = jax.random.normal(k2, (B, T2, D), dtype=jnp.float32)
    l1 = jnp.array([12, 16], dtype=jnp.int32)
    l2 = jnp.array([8, 5], dtype=jnp.int32)

    # nn.Linear(3D, 1, bias=False) weight: shape (1, 3D) -> reshape to (3, D)
    bound = 1.0 / (3 * D) ** 0.5
    w = jax.random.uniform(k3, (3, D), minval=-bound, maxval=bound,
                           dtype=jnp.float32)

    u_ref, h_ref = bidaf_reference(s1, l1, s2, l2, w)

    # Default path (heuristic keeps D=32 unpadded). Kernel uses bf16 MXU operands,
    # so compare against the exact-f32 reference at bf16-level tolerance.
    u_tile, h_tile = bidaf_attn(s1, l1, s2, l2, w, get_h=True)
    jax.block_until_ready((u_tile, h_tile))
    assert u_tile.shape == (B, T1, D) and h_tile.shape == (B, T1, D)
    assert jnp.allclose(u_tile, u_ref, rtol=2e-2, atol=2e-2), "u_tile mismatch"
    assert jnp.allclose(h_tile, h_ref, rtol=2e-2, atol=2e-2), "h_tile mismatch"

    # Lane-dense path (D zero-padded to 128) — exercises the padded-output store.
    u2, h2 = bidaf_attn(s1, l1, s2, l2, w, get_h=True, pad_lanes=True)
    jax.block_until_ready((u2, h2))
    assert jnp.allclose(u2, u_ref, rtol=2e-2, atol=2e-2), "u_tile (lane-padded) mismatch"
    assert jnp.allclose(h2, h_ref, rtol=2e-2, atol=2e-2), "h_tile (lane-padded) mismatch"

    print("KERNEL_OK")
</pallas_src>

<mosaic_0001>
module attributes {stable_mosaic.version = 11 : i64} {
  func.func @bidaf_kernel(%arg0: i32, %arg1: memref<1x1x2xi32, #tpu.memory_space<vmem>>, %arg2: memref<1x16x32xf32, #tpu.memory_space<vmem>>, %arg3: memref<1x8x32xf32, #tpu.memory_space<vmem>>, %arg4: memref<3x32xf32, #tpu.memory_space<vmem>>, %arg5: memref<1x16x32xf32, #tpu.memory_space<vmem>>, %arg6: memref<1x1x32xf32, #tpu.memory_space<vmem>>) attributes {dimension_semantics = [#tpu.dimension_semantics<parallel>], iteration_bounds = array<i64: 2>, scalar_prefetch = 0 : i64, scratch_operands = 0 : i64, tpu.core_type = #tpu.core_type<tc>, window_params = [{transform_indices = @transform_0, window_bounds = array<i64: 1, 1, 2>}, {transform_indices = @transform_1, window_bounds = array<i64: 1, 16, 32>}, {transform_indices = @transform_2, window_bounds = array<i64: 1, 8, 32>}, {pipeline_mode = #tpu.pipeline_mode<synchronous>, transform_indices = @transform_3, window_bounds = array<i64: 3, 32>}, {transform_indices = @transform_4, window_bounds = array<i64: 1, 16, 32>}, {transform_indices = @transform_5, window_bounds = array<i64: 1, 1, 32>}]} {
    %c0 = arith.constant 0 : index
    %c0_0 = arith.constant 0 : index
    %c0_1 = arith.constant 0 : index
    %0 = vector.load %arg2[%c0, %c0_0, %c0_1] : memref<1x16x32xf32, #tpu.memory_space<vmem>>, vector<1x16x32xf32>
    %c0_2 = arith.constant 0 : index
    %c0_3 = arith.constant 0 : index
    %c0_4 = arith.constant 0 : index
    %1 = vector.load %arg3[%c0_2, %c0_3, %c0_4] : memref<1x8x32xf32, #tpu.memory_space<vmem>>, vector<1x8x32xf32>
    %c0_5 = arith.constant 0 : index
    %c0_6 = arith.constant 0 : index
    %2 = vector.load %arg4[%c0_5, %c0_6] : memref<3x32xf32, #tpu.memory_space<vmem>>, vector<1x32xf32>
    %c1 = arith.constant 1 : index
    %c0_7 = arith.constant 0 : index
    %3 = vector.load %arg4[%c1, %c0_7] : memref<3x32xf32, #tpu.memory_space<vmem>>, vector<1x32xf32>
    %c2 = arith.constant 2 : index
    %c0_8 = arith.constant 0 : index
    %4 = vector.load %arg4[%c2, %c0_8] : memref<3x32xf32, #tpu.memory_space<vmem>>, vector<1x32xf32>
    %c0_9 = arith.constant 0 : index
    %c0_10 = arith.constant 0 : index
    %c0_11 = arith.constant 0 : index
    %5 = vector.load %arg1[%c0_9, %c0_10, %c0_11] : memref<1x1x2xi32, #tpu.memory_space<vmem>>, vector<1x1x1xi32>
    %c0_12 = arith.constant 0 : index
    %c0_13 = arith.constant 0 : index
    %c1_14 = arith.constant 1 : index
    %6 = vector.load %arg1[%c0_12, %c0_13, %c1_14] : memref<1x1x2xi32, #tpu.memory_space<vmem>>, vector<1x1x1xi32>
    %7 = vector.shape_cast %2 : vector<1x32xf32> to vector<1x1x32xf32>
    %8 = vector.broadcast %7 : vector<1x1x32xf32> to vector<1x16x32xf32>
    %9 = arith.mulf %0, %8 : vector<1x16x32xf32>
    %cst = arith.constant dense<0.000000e+00> : vector<1x16xf32>
    %10 = vector.multi_reduction <add>, %9, %cst [2] : vector<1x16x32xf32> to vector<1x16xf32>
    %11 = vector.shape_cast %10 : vector<1x16xf32> to vector<1x16x1xf32>
    %12 = arith.truncf %1 : vector<1x8x32xf32> to vector<1x8x32xbf16>
    %13 = vector.shape_cast %4 : vector<1x32xf32> to vector<1x1x32xf32>
    %14 = vector.broadcast %13 : vector<1x1x32xf32> to vector<1x16x32xf32>
    %15 = arith.mulf %0, %14 : vector<1x16x32xf32>
    %16 = vector.shape_cast %3 : vector<1x32xf32> to vector<1x1x32xf32>
    %17 = vector.broadcast %16 : vector<1x1x32xf32> to vector<1x16x32xf32>
    %18 = arith.addf %15, %17 : vector<1x16x32xf32>
    %19 = arith.truncf %18 : vector<1x16x32xf32> to vector<1x16x32xbf16>
    "tpu.trace_start"() <{level = 10 : i32, message = "bid,bjd->bij"}> : () -> ()
    %cst_15 = arith.constant dense<0.000000e+00> : vector<1x16x8xf32>
    %20 = tpu.matmul %19, %12, %cst_15 {dimension_numbers = #tpu.dot_dimension_numbers<[2], [2], [1], [1], [0, 0, 0, 1, 1, 1], [0], [0]>} : vector<1x16x32xbf16>, vector<1x8x32xbf16>, vector<1x16x8xf32> -> vector<1x16x8xf32>
    "tpu.trace_stop"() : () -> ()
    %21 = tpu.iota {dimensions = array<i32: 2>} : vector<1x1x8xi32>
    %22 = vector.broadcast %6 : vector<1x1x1xi32> to vector<1x1x8xi32>
    %23 = arith.cmpi slt, %21, %22 : vector<1x1x8xi32>
    %cst_16 = arith.constant 0xFF800000 : f32
    %24 = vector.shape_cast %23 : vector<1x1x8xi1> to vector<1x1x8xi1>
    %25 = vector.broadcast %24 : vector<1x1x8xi1> to vector<1x16x8xi1>
    %26 = vector.broadcast %cst_16 : f32 to vector<1x16x8xf32>
    %27 = arith.select %25, %20, %26 : vector<1x16x8xi1>, vector<1x16x8xf32>
    %28 = tpu.iota {dimensions = array<i32: 1>} : vector<1x16x1xi32>
    %29 = vector.broadcast %5 : vector<1x1x1xi32> to vector<1x16x1xi32>
    %30 = arith.cmpi slt, %28, %29 : vector<1x16x1xi32>
    %cst_17 = arith.constant dense<0xFF800000> : vector<1x16xf32>
    %31 = vector.multi_reduction <maximumf>, %27, %cst_17 [2] : vector<1x16x8xf32> to vector<1x16xf32>
    %32 = vector.shape_cast %31 : vector<1x16xf32> to vector<1x16x1xf32>
    %cst_18 = arith.constant 0xFF800000 : f32
    %33 = vector.broadcast %cst_18 : f32 to vector<1x16x1xf32>
    %34 = arith.cmpf oeq, %32, %33 : vector<1x16x1xf32>
    %cst_19 = arith.constant 0.000000e+00 : f32
    %35 = vector.broadcast %cst_19 : f32 to vector<1x16x1xf32>
    %36 = arith.select %34, %35, %32 : vector<1x16x1xi1>, vector<1x16x1xf32>
    %37 = vector.broadcast %36 : vector<1x16x1xf32> to vector<1x16x8xf32>
    %38 = arith.subf %27, %37 : vector<1x16x8xf32>
    %39 = math.exp %38 : vector<1x16x8xf32>
    %cst_20 = arith.constant dense<0.000000e+00> : vector<1x16xf32>
    %40 = vector.multi_reduction <add>, %39, %cst_20 [2] : vector<1x16x8xf32> to vector<1x16xf32>
    %41 = vector.shape_cast %40 : vector<1x16xf32> to vector<1x16x1xf32>
    %cst_21 = arith.constant 0.000000e+00 : f32
    %42 = vector.broadcast %cst_21 : f32 to vector<1x16x1xf32>
    %43 = arith.cmpf ogt, %41, %42 : vector<1x16x1xf32>
    %44 = arith.andi %30, %43 : vector<1x16x1xi1>
    %cst_22 = arith.constant 1.000000e+00 : f32
    %45 = vector.broadcast %cst_22 : f32 to vector<1x16x1xf32>
    %46 = arith.divf %45, %41 : vector<1x16x1xf32>
    %cst_23 = arith.constant 0.000000e+00 : f32
    %47 = vector.broadcast %cst_23 : f32 to vector<1x16x1xf32>
    %48 = arith.select %44, %46, %47 : vector<1x16x1xi1>, vector<1x16x1xf32>
    %49 = arith.truncf %39 : vector<1x16x8xf32> to vector<1x16x8xbf16>
    "tpu.trace_start"() <{level = 10 : i32, message = "bij,bjd->bid"}> : () -> ()
    %cst_24 = arith.constant dense<0.000000e+00> : vector<1x16x32xf32>
    %50 = tpu.matmul %49, %12, %cst_24 {dimension_numbers = #tpu.dot_dimension_numbers<[2], [1], [1], [2], [0, 0, 0, 1, 1, 2], [0], [0]>} : vector<1x16x8xbf16>, vector<1x8x32xbf16>, vector<1x16x32xf32> -> vector<1x16x32xf32>
    "tpu.trace_stop"() : () -> ()
    %51 = vector.broadcast %48 : vector<1x16x1xf32> to vector<1x16x32xf32>
    %52 = arith.mulf %50, %51 : vector<1x16x32xf32>
    %c0_25 = arith.constant 0 : index
    %c0_26 = arith.constant 0 : index
    %c0_27 = arith.constant 0 : index
    %53 = vector.load %arg5[%c0_25, %c0_26, %c0_27] : memref<1x16x32xf32, #tpu.memory_space<vmem>>, vector<1x16x32xf32>
    tpu.vector_store %arg5[%c0_25, %c0_26, %c0_27], %52 {strides = array<i32>} : memref<1x16x32xf32, #tpu.memory_space<vmem>>, vector<1x16x32xf32>,
    %54 = arith.addf %32, %11 : vector<1x16x1xf32>
    %cst_28 = arith.constant 0xFF800000 : f32
    %55 = vector.broadcast %cst_28 : f32 to vector<1x16x1xf32>
    %56 = arith.select %30, %54, %55 : vector<1x16x1xi1>, vector<1x16x1xf32>
    %cst_29 = arith.constant dense<0xFF800000> : vector<1x1xf32>
    %57 = vector.multi_reduction <maximumf>, %56, %cst_29 [1] : vector<1x16x1xf32> to vector<1x1xf32>
    %58 = vector.shape_cast %57 : vector<1x1xf32> to vector<1x1x1xf32>
    %cst_30 = arith.constant 0xFF800000 : f32
    %59 = vector.broadcast %cst_30 : f32 to vector<1x1x1xf32>
    %60 = arith.cmpf oeq, %58, %59 : vector<1x1x1xf32>
    %cst_31 = arith.constant 0.000000e+00 : f32
    %61 = vector.broadcast %cst_31 : f32 to vector<1x1x1xf32>
    %62 = arith.select %60, %61, %58 : vector<1x1x1xi1>, vector<1x1x1xf32>
    %63 = vector.broadcast %62 : vector<1x1x1xf32> to vector<1x16x1xf32>
    %64 = arith.subf %56, %63 : vector<1x16x1xf32>
    %65 = math.exp %64 : vector<1x16x1xf32>
    %cst_32 = arith.constant dense<0.000000e+00> : vector<1x1xf32>
    %66 = vector.multi_reduction <add>, %65, %cst_32 [1] : vector<1x16x1xf32> to vector<1x1xf32>
    %67 = vector.shape_cast %66 : vector<1x1xf32> to vector<1x1x1xf32>
    %68 = vector.broadcast %65 : vector<1x16x1xf32> to vector<1x16x32xf32>
    %69 = arith.mulf %68, %0 : vector<1x16x32xf32>
    %cst_33 = arith.constant dense<0.000000e+00> : vector<1x32xf32>
    %70 = vector.multi_reduction <add>, %69, %cst_33 [1] : vector<1x16x32xf32> to vector<1x32xf32>
    %71 = vector.shape_cast %67 : vector<1x1x1xf32> to vector<1x1xf32>
    %72 = vector.broadcast %71 : vector<1x1xf32> to vector<1x32xf32>
    %73 = arith.divf %70, %72 : vector<1x32xf32>
    %74 = vector.shape_cast %73 : vector<1x32xf32> to vector<1x1x32xf32>
    %c0_34 = arith.constant 0 : index
    %c0_35 = arith.constant 0 : index
    %c0_36 = arith.constant 0 : index
    %75 = vector.load %arg6[%c0_34, %c0_35, %c0_36] : memref<1x1x32xf32, #tpu.memory_space<vmem>>, vector<1x1x32xf32>
    tpu.vector_store %arg6[%c0_34, %c0_35, %c0_36], %74 {strides = array<i32>} : memref<1x1x32xf32, #tpu.memory_space<vmem>>, vector<1x1x32xf32>,
    return
  }
  func.func @transform_0(%arg0: i32) -> (i32, i32, i32) {
    %c0_i32 = arith.constant 0 : i32
    %c0_i32_0 = arith.constant 0 : i32
    %c0_i32_1 = arith.constant 0 : i32
    return %arg0, %c0_i32, %c0_i32_0 : i32, i32, i32
  }
  func.func @transform_1(%arg0: i32) -> (i32, i32, i32) {
    %c0_i32 = arith.constant 0 : i32
    %c0_i32_0 = arith.constant 0 : i32
    %c0_i32_1 = arith.constant 0 : i32
    return %arg0, %c0_i32, %c0_i32_0 : i32, i32, i32
  }
  func.func @transform_2(%arg0: i32) -> (i32, i32, i32) {
    %c0_i32 = arith.constant 0 : i32
    %c0_i32_0 = arith.constant 0 : i32
    %c0_i32_1 = arith.constant 0 : i32
    return %arg0, %c0_i32, %c0_i32_0 : i32, i32, i32
  }
  func.func @transform_3(%arg0: i32) -> (i32, i32) {
    %c0_i32 = arith.constant 0 : i32
    %c0_i32_0 = arith.constant 0 : i32
    %c0_i32_1 = arith.constant 0 : i32
    return %c0_i32, %c0_i32_0 : i32, i32
  }
  func.func @transform_4(%arg0: i32) -> (i32, i32, i32) {
    %c0_i32 = arith.constant 0 : i32
    %c0_i32_0 = arith.constant 0 : i32
    %c0_i32_1 = arith.constant 0 : i32
    return %arg0, %c0_i32, %c0_i32_0 : i32, i32, i32
  }
  func.func @transform_5(%arg0: i32) -> (i32, i32, i32) {
    %c0_i32 = arith.constant 0 : i32
    %c0_i32_0 = arith.constant 0 : i32
    %c0_i32_1 = arith.constant 0 : i32
    return %arg0, %c0_i32, %c0_i32_0 : i32, i32, i32
  }
}

</mosaic_0001>

<llo_original>
// kernel: tpu_custom_call.1
$region0: #{tpu_custom_call.1}
  #allocation0 [shape = 'u32[]', space=smem, size = 0x4, offset = 0x4, fixed_abs, tag = 'smem constant byte address 0x4 - core index']
  #allocation1 [shape = 'u32[144,128]{1,0:T(1,128)}', space=vmem, size = 0x12000, scoped, tag = 'internal scratch']
  %s0 = inlined_call_operand.hbm [shape: s32[2,1,2], index: 0, kind: input, shape index: {}]
  %s1 = inlined_call_operand.hbm [shape: f32[2,16,32], index: 1, kind: input, shape index: {}]
  %s2 = inlined_call_operand.hbm [shape: f32[2,8,32], index: 2, kind: input, shape index: {}]
  %s3 = inlined_call_operand.vmem [shape: f32[3,32], index: 3, kind: input, shape index: {}]
  %s4 = inlined_call_operand.hbm [shape: f32[2,16,32], index: 4, kind: output, shape index: {0}]
  %s5 = inlined_call_operand.hbm [shape: f32[2,1,32], index: 5, kind: output, shape index: {1}]
  %6 = xla_tuple %s4, %s5
  %s7 = sld [smem:[#allocation0]]
  $region69: #{tpu_custom_call.1} parent=0
    _
  %s9 = ssub.s32 1, %s7
  %s10 = scalar_select 0, %s9, %s7
  $region1: #{tpu_custom_call.1} parent=0
    #allocation2 [shape = 'u8[1024]{0}', space=vmem, size = 0x400, scoped, tag = 'input window, operand 0']
    #allocation3 [shape = 's32[2]{0}', space=sflag, size = 0x8, scoped, tag = 'scoped memory for tpu_custom_call.1']
    #allocation4 [shape = 's32[2]{0}', space=sflag, size = 0x8, scoped, tag = 'scoped memory for tpu_custom_call.1']
    #allocation5 [shape = 'u8[16384]{0}', space=vmem, size = 0x4000, scoped, tag = 'input window, operand 1']
    #allocation6 [shape = 's32[2]{0}', space=sflag, size = 0x8, scoped, tag = 'scoped memory for tpu_custom_call.1']
    #allocation7 [shape = 'u8[8192]{0}', space=vmem, size = 0x2000, scoped, tag = 'input window, operand 2']
    #allocation8 [shape = 'u8[16384]{0}', space=vmem, size = 0x4000, scoped, tag = 'output window, operand 0']
    #allocation9 [shape = 'u8[1024]{0}', space=vmem, size = 0x400, scoped, tag = 'output window, operand 1']
    #allocation10 [shape = 's32[2]{0}', space=sflag, size = 0x8, scoped, tag = 'scoped memory for tpu_custom_call.1']
    %11 = vsyncpa [#allocation3], 0
    %s12 = scalar_lea.sflag [#allocation3], 1
    %13 = vsyncpa %s12, 0
    %14 = vsyncpa [#allocation6], 0
    %s15 = scalar_lea.sflag [#allocation6], 1
    %16 = vsyncpa %s15, 0
    %17 = vsyncpa [#allocation4], 0
    %s18 = scalar_lea.sflag [#allocation4], 1
    %19 = vsyncpa %s18, 0
    %20 = vsyncpa [#allocation10], 0
    %s21 = scalar_lea.sflag [#allocation10], 1
    %22 = vsyncpa %s21, 0
    loop: start=0, step=1, limit=4
    $region2: #{tpu_custom_call.1} parent=1 // loop_pre_header
      _
    $region3: #{tpu_custom_call.1} parent=1 // loop_header
      %s24 = sphi 0, %s28
      %p25 = scmp.ge.s32.totalorder %s24, 4
      %s34 = sphi 0, %s36
      %s37 = sphi 0, %s34
      %s38 = sphi 0, %s37
      %s54 = sphi 0, %s38
      %s60 = sphi 0, %s62
      %s63 = sphi 0, %s60
      %s64 = sphi 0, %s63
      %s80 = sphi 0, %s64
      %s86 = sphi 0, %s88
      %s89 = sphi 0, %s86
      %s90 = sphi 0, %s89
      %s106 = sphi 0, %s90
      %s110 = sphi 0, %s110
      %s112 = sphi 0, %s110
      %s113 = sphi 0, %s112
      %s127 = sphi 0, %s113
      %s133 = sphi 0, %s135
      %s136 = sphi 0, %s133
      %s137 = sphi 0, %s136
      %s153 = sphi 0, %s137
      %s159 = sphi 0, %s161
      %s162 = sphi 0, %s159
      %s163 = sphi 0, %s162
      %s179 = sphi 0, %s163
    $region4: #{tpu_custom_call.1} parent=1 // loop_header_branch
      %27 = sbr.rel (%p25) target = $region8
    $region5: #{tpu_custom_call.1} parent=1 // loop_body
      %s29 = ssub.s32 %s24, 1
      %s30 = ssub.s32 %s24, 2
      %s31 = sadd.s32 %s24, 1
      %s32 = ssub.s32 %s24, %s31
      %p33 = scmp.eq.s32.totalorder %s32, 0
      %s35 = sadd.s32 %s34, 1
      %s36 = scalar_select %p33, %s34, %s35
      %p39 = pneg %p33
      %p40 = scmp.eq.s32.totalorder %s24, 1
      %p41 = por %p39, %p40
      %p42 = scmp.ne.s32.totalorder %s34, %s37
      %p43 = scmp.eq.s32.totalorder %s24, 0
      %p44 = por %p42, %p43
      %p45 = scmp.ne.s32.totalorder %s34, %s37
      %p46 = scmp.eq.s32.totalorder %s29, 1
      %p47 = por %p45, %p46
      %p48 = scmp.ne.s32.totalorder %s37, %s38
      %p49 = scmp.eq.s32.totalorder %s29, 0
      %p50 = por %p48, %p49
      %p51 = scmp.ne.s32.totalorder %s37, %s38
      %p52 = scmp.eq.s32.totalorder %s30, 1
      %p53 = por %p51, %p52
      %p55 = scmp.ne.s32.totalorder %s38, %s54
      %p56 = scmp.eq.s32.totalorder %s30, 0
      %p57 = por %p55, %p56
      %s58 = ssub.s32 %s24, %s31
      %p59 = scmp.eq.s32.totalorder %s58, 0
      %s61 = sadd.s32 %s60, 1
      %s62 = scalar_select %p59, %s60, %s61
      %p65 = pneg %p59
      %p66 = scmp.eq.s32.totalorder %s24, 1
      %p67 = por %p65, %p66
      %p68 = scmp.ne.s32.totalorder %s60, %s63
      %p69 = scmp.eq.s32.totalorder %s24, 0
      %p70 = por %p68, %p69
      %p71 = scmp.ne.s32.totalorder %s60, %s63
      %p72 = scmp.eq.s32.totalorder %s29, 1
      %p73 = por %p71, %p72
      %p74 = scmp.ne.s32.totalorder %s63, %s64
      %p75 = scmp.eq.s32.totalorder %s29, 0
      %p76 = por %p74, %p75
      %p77 = scmp.ne.s32.totalorder %s63, %s64
      %p78 = scmp.eq.s32.totalorder %s30, 1
      %p79 = por %p77, %p78
      %p81 = scmp.ne.s32.totalorder %s64, %s80
      %p82 = scmp.eq.s32.totalorder %s30, 0
      %p83 = por %p81, %p82
      %s84 = ssub.s32 %s24, %s31
      %p85 = scmp.eq.s32.totalorder %s84, 0
      %s87 = sadd.s32 %s86, 1
      %s88 = scalar_select %p85, %s86, %s87
      %p91 = pneg %p85
      %p92 = scmp.eq.s32.totalorder %s24, 1
      %p93 = por %p91, %p92
      %p94 = scmp.ne.s32.totalorder %s86, %s89
      %p95 = scmp.eq.s32.totalorder %s24, 0
      %p96 = por %p94, %p95
      %p97 = scmp.ne.s32.totalorder %s86, %s89
      %p98 = scmp.eq.s32.totalorder %s29, 1
      %p99 = por %p97, %p98
      %p100 = scmp.ne.s32.totalorder %s89, %s90
      %p101 = scmp.eq.s32.totalorder %s29, 0
      %p102 = por %p100, %p101
      %p103 = scmp.ne.s32.totalorder %s89, %s90
      %p104 = scmp.eq.s32.totalorder %s30, 1
      %p105 = por %p103, %p104
      %p107 = scmp.ne.s32.totalorder %s90, %s106
      %p108 = scmp.eq.s32.totalorder %s30, 0
      %p109 = por %p107, %p108
      %s111 = sadd.s32 %s110, 1
      %p114 = scmp.eq.s32.totalorder %s24, 1
      %p115 = scmp.ne.s32.totalorder %s110, %s112
      %p116 = scmp.eq.s32.totalorder %s24, 0
      %p117 = por %p115, %p116
      %p118 = scmp.ne.s32.totalorder %s110, %s112
      %p119 = scmp.eq.s32.totalorder %s29, 1
      %p120 = por %p118, %p119
      %p121 = scmp.ne.s32.totalorder %s112, %s113
      %p122 = scmp.eq.s32.totalorder %s29, 0
      %p123 = por %p121, %p122
      %p124 = scmp.ne.s32.totalorder %s112, %s113
      %p125 = scmp.eq.s32.totalorder %s30, 1
      %p126 = por %p124, %p125
      %p128 = scmp.ne.s32.totalorder %s113, %s127
      %p129 = scmp.eq.s32.totalorder %s30, 0
      %p130 = por %p128, %p129
      %s131 = ssub.s32 %s24, %s31
      %p132 = scmp.eq.s32.totalorder %s131, 0
      %s134 = sadd.s32 %s133, 1
      %s135 = scalar_select %p132, %s133, %s134
      %p138 = pneg %p132
      %p139 = scmp.eq.s32.totalorder %s24, 1
      %p140 = por %p138, %p139
      %p141 = scmp.ne.s32.totalorder %s133, %s136
      %p142 = scmp.eq.s32.totalorder %s24, 0
      %p143 = por %p141, %p142
      %p144 = scmp.ne.s32.totalorder %s133, %s136
      %p145 = scmp.eq.s32.totalorder %s29, 1
      %p146 = por %p144, %p145
      %p147 = scmp.ne.s32.totalorder %s136, %s137
      %p148 = scmp.eq.s32.totalorder %s29, 0
      %p149 = por %p147, %p148
      %p150 = scmp.ne.s32.totalorder %s136, %s137
      %p151 = scmp.eq.s32.totalorder %s30, 1
      %p152 = por %p150, %p151
      %p154 = scmp.ne.s32.totalorder %s137, %s153
      %p155 = scmp.eq.s32.totalorder %s30, 0
      %p156 = por %p154, %p155
      %s157 = ssub.s32 %s24, %s31
      %p158 = scmp.eq.s32.totalorder %s157, 0
      %s160 = sadd.s32 %s159, 1
      %s161 = scalar_select %p158, %s159, %s160
      %p164 = pneg %p158
      %p165 = scmp.eq.s32.totalorder %s24, 1
      %p166 = por %p164, %p165
      %p167 = scmp.ne.s32.totalorder %s159, %s162
      %p168 = scmp.eq.s32.totalorder %s24, 0
      %p169 = por %p167, %p168
      %p170 = scmp.ne.s32.totalorder %s159, %s162
      %p171 = scmp.eq.s32.totalorder %s29, 1
      %p172 = por %p170, %p171
      %p173 = scmp.ne.s32.totalorder %s162, %s163
      %p174 = scmp.eq.s32.totalorder %s29, 0
      %p175 = por %p173, %p174
      %p176 = scmp.ne.s32.totalorder %s162, %s163
      %p177 = scmp.eq.s32.totalorder %s30, 1
      %p178 = por %p176, %p177
      %p180 = scmp.ne.s32.totalorder %s163, %s179
      %p181 = scmp.eq.s32.totalorder %s30, 0
      %p182 = por %p180, %p181
      %p183 = scmp.le.s32.totalorder 1, %s24
      %p184 = scmp.lt.s32.totalorder %s24, 3
      %p185 = pnand %p183, %p184
      %p186 = pneg %p185
      // Predicated region
      $region9: #{tpu_custom_call.1} parent=5 // pred_check
        _
      $region10: #{tpu_custom_call.1} parent=5 // pred_check_branch
        %188 = sbr.rel (%p185) target = $region12
      $region11: #{tpu_custom_call.1} parent=5 // pred_region
        %s189 = ssub.s32 %s24, 1
        // Predicated region
        $region13: #{tpu_custom_call.1} parent=11 // pred_check
          %p190 = pneg %p123
        $region14: #{tpu_custom_call.1} parent=11 // pred_check_branch
          %192 = sbr.rel (%p190) target = $region16
        $region15: #{tpu_custom_call.1} parent=11 // pred_region
          _
        $region16: #{tpu_custom_call.1} parent=11 // pred_fallthru
          _
      $region12: #{tpu_custom_call.1} parent=5 // pred_fallthru
        _
      %p193 = scmp.lt.s32.totalorder %s24, 2
      // Predicated region
      $region17: #{tpu_custom_call.1} parent=5 // pred_check
        %p194 = pneg %p193
      $region18: #{tpu_custom_call.1} parent=5 // pred_check_branch
        %196 = sbr.rel (%p194) target = $region20
      $region19: #{tpu_custom_call.1} parent=5 // pred_region
        // Predicated region
        $region21: #{tpu_custom_call.1} parent=19 // pred_check
          %p197 = pneg %p44
        $region22: #{tpu_custom_call.1} parent=19 // pred_check_branch
          %199 = sbr.rel (%p197) target = $region24
        $region23: #{tpu_custom_call.1} parent=19 // pred_region
          %s200 = sand.u32 %s34, 1
          %s201 = scalar_lea.sflag [#allocation3], %s200
          %s202 = sand.u32 %s34, 1
          %s203 = scalar_lea.vmem [#allocation2], %s202
          %s205 = ssub.s32 16, 16
          %206 = vsyncadd %s201, %s205
          %s207 = smul.addr %s24, 16
          %s208 = scalar_lea.hbm %s0, %s207
          %s210 = sshll.u32 %s203, 4
          %s211 = int_to_ptr.vmem [resolvable:$true] %s210
          %213 = dma.hbm_to_vmem [thread:$0]  %s208, 16, %s211, %s201
        $region24: #{tpu_custom_call.1} parent=19 // pred_fallthru
          _
        // Predicated region
        $region25: #{tpu_custom_call.1} parent=19 // pred_check
          %p214 = pneg %p70
        $region26: #{tpu_custom_call.1} parent=19 // pred_check_branch
          %216 = sbr.rel (%p214) target = $region28
        $region27: #{tpu_custom_call.1} parent=19 // pred_region
          %s217 = sand.u32 %s24, 1
          %s218 = scalar_lea.sflag [#allocation6], %s217
          %s219 = sand.u32 %s60, 1
          %s220 = smul.addr %s219, 16
          %s221 = scalar_lea.vmem [#allocation5], %s220
          %s223 = ssub.s32 256, 256
          %224 = vsyncadd %s218, %s223
          %s225 = smul.addr %s24, 2
          %s226 = smul.addr %s225, 128
          %s227 = scalar_lea.hbm %s1, %s226
          %s228 = sshll.u32 %s221, 4
          %s229 = int_to_ptr.vmem [resolvable:$true] %s228
          %234 = dma.hbm_to_vmem [thread:$0]  %s227, 256, %s229, %s218, 128, 128, 8
        $region28: #{tpu_custom_call.1} parent=19 // pred_fallthru
          _
        // Predicated region
        $region29: #{tpu_custom_call.1} parent=19 // pred_check
          %p235 = pneg %p96
        $region30: #{tpu_custom_call.1} parent=19 // pred_check_branch
          %237 = sbr.rel (%p235) target = $region32
        $region31: #{tpu_custom_call.1} parent=19 // pred_region
          %s238 = sand.u32 %s24, 1
          %s239 = scalar_lea.sflag [#allocation6], %s238
          %s240 = sand.u32 %s86, 1
          %s241 = smul.addr %s240, 8
          %s242 = scalar_lea.vmem [#allocation7], %s241
          %s244 = ssub.s32 128, 128
          %245 = vsyncadd %s239, %s244
          %s246 = smul.addr %s24, 128
          %s247 = scalar_lea.hbm %s2, %s246
          %s249 = sshll.u32 %s242, 4
          %s250 = int_to_ptr.vmem [resolvable:$true] %s249
          %252 = dma.hbm_to_vmem [thread:$0]  %s247, 128, %s250, %s239
        $region32: #{tpu_custom_call.1} parent=19 // pred_fallthru
          _
      $region20: #{tpu_custom_call.1} parent=5 // pred_fallthru
        _
      %p253 = scmp.le.s32.totalorder 1, %s24
      %p254 = scmp.lt.s32.totalorder %s24, 3
      %p255 = pnand %p253, %p254
      %p256 = pneg %p255
      // Predicated region
      $region33: #{tpu_custom_call.1} parent=5 // pred_check
        _
      $region34: #{tpu_custom_call.1} parent=5 // pred_check_branch
        %258 = sbr.rel (%p255) target = $region36
      $region35: #{tpu_custom_call.1} parent=5 // pred_region
        %s259 = ssub.s32 %s24, 1
        %s260 = sand.u32 %s37, 1
        %s261 = scalar_lea.sflag [#allocation3], %s260
        %s262 = sand.u32 %s37, 1
        %s263 = scalar_lea.vmem [#allocation2], %s262
        // Predicated region
        $region37: #{tpu_custom_call.1} parent=35 // pred_check
          %p264 = pneg %p50
        $region38: #{tpu_custom_call.1} parent=35 // pred_check_branch
          %266 = sbr.rel (%p264) target = $region40
        $region39: #{tpu_custom_call.1} parent=35 // pred_region
          %267 = dma.done %s261, 16
        $region40: #{tpu_custom_call.1} parent=35 // pred_fallthru
          _
        %s268 = sand.u32 %s29, 1
        %s269 = scalar_lea.sflag [#allocation6], %s268
        %s270 = sand.u32 %s63, 1
        %s271 = smul.addr %s270, 16
        %s272 = scalar_lea.vmem [#allocation5], %s271
        // Predicated region
        $region41: #{tpu_custom_call.1} parent=35 // pred_check
          %p273 = pneg %p76
        $region42: #{tpu_custom_call.1} parent=35 // pred_check_branch
          %275 = sbr.rel (%p273) target = $region44
        $region43: #{tpu_custom_call.1} parent=35 // pred_region
          %276 = dma.done %s269, 256
        $region44: #{tpu_custom_call.1} parent=35 // pred_fallthru
          _
        %s277 = sand.u32 %s29, 1
        %s278 = scalar_lea.sflag [#allocation6], %s277
        %s279 = sand.u32 %s89, 1
        %s280 = smul.addr %s279, 8
        %s281 = scalar_lea.vmem [#allocation7], %s280
        // Predicated region
        $region45: #{tpu_custom_call.1} parent=35 // pred_check
          %p282 = pneg %p102
        $region46: #{tpu_custom_call.1} parent=35 // pred_check_branch
          %284 = sbr.rel (%p282) target = $region48
        $region47: #{tpu_custom_call.1} parent=35 // pred_region
          %285 = dma.done %s278, 128
        $region48: #{tpu_custom_call.1} parent=35 // pred_fallthru
          _
        %s286 = sand.u32 %s37, 1
        %s287 = scalar_lea.sflag [#allocation3], %s286
        %s288 = sand.u32 %s37, 1
        %s289 = scalar_lea.vmem [#allocation2], %s288
        %p290 = pneg %p50
        %p291 = pneg %p47
        %s292 = sand.u32 %s29, 1
        %s293 = scalar_lea.sflag [#allocation6], %s292
        %s294 = sand.u32 %s63, 1
        %s295 = smul.addr %s294, 16
        %s296 = scalar_lea.vmem [#allocation5], %s295
        %p297 = pneg %p76
        %p298 = pneg %p73
        %s299 = sand.u32 %s29, 1
        %s300 = scalar_lea.sflag [#allocation6], %s299
        %s301 = sand.u32 %s89, 1
        %s302 = smul.addr %s301, 8
        %s303 = scalar_lea.vmem [#allocation7], %s302
        %p304 = pneg %p102
        %p305 = pneg %p99
        %p306 = pneg %p123
        %p307 = pneg %p120
        %p308 = pneg %p149
        %p309 = pneg %p146
        %s310 = sand.u32 %s136, 1
        %s311 = scalar_lea.sflag [#allocation4], %s310
        %s312 = sand.u32 %s136, 1
        %s313 = smul.addr %s312, 16
        %s314 = scalar_lea.vmem [#allocation8], %s313
        %p315 = pneg %p175
        %p316 = pneg %p172
        %s317 = sand.u32 %s162, 1
        %s318 = scalar_lea.sflag [#allocation10], %s317
        %s319 = sand.u32 %s162, 1
        %s320 = scalar_lea.vmem [#allocation9], %s319
        %v322 = vld [vmem:[%s272] sm:$0xff]
        %v323 = vld [vmem:[%s272 + $0x8] sm:$0xff]
        %v324 = vld [vmem:[%s281] sm:$0xff]
        %v325 = vld [vmem:[%s3] sm:$0x1]
        %v326 = vld [vmem:[%s3 + $0x1] sm:$0x1]
        %v327 = vld [vmem:[%s3 + $0x2] sm:$0x1]
        %v328 = vld [vmem:[%s263] sm:$0x1]
        %v329 = vlaneseq
        %v330 = vshrl.u32 %v329, 7
        %v331 = vsub.s32 0, %v330
        %v332 = vrot.slane %v325, %v331
        %v333 = vmul.f32 %v322, %v332
        %v334 = vmul.f32 %v323, %v332
        %vm335 = vcmask 261120
        %v336 = vsel %vm335, %v333, 0.0
        %337 = vadd.xlane.f32.xlu0 %v336
        %v338 = vpop.xlane.xlu0 %337
        %v339 = vsel %vm335, %v334, 0.0
        %340 = vadd.xlane.f32.xlu0 %v339
        %v341 = vpop.xlane.xlu0 %340
        %v342 = vpack.c.bf16 %v324, %v324
        %v343 = vlaneseq
        %v344 = vshrl.u32 %v343, 7
        %v345 = vsub.s32 0, %v344
        %v346 = vrot.slane %v327, %v345
        %v347 = vmul.f32 %v322, %v346
        %v348 = vmul.f32 %v323, %v346
        %v349 = vlaneseq
        %v350 = vshrl.u32 %v349, 7
        %v351 = vsub.s32 0, %v350
        %v352 = vrot.slane %v326, %v351
        %v353 = vadd.f32 %v347, %v352
        %v354 = vadd.f32 %v348, %v352
        %v355 = vpack.c.bf16 %v354, %v353
        %v357 = vsel %vm335, %v355, 0
        %v360 = vsel %vm335, %v342, 0
        %362 = vmatprep.subr.bf16.mxu0 0
        %363 = vmatpush1.bf16.xpose.msra.mxu0 0
        %364 = vmatprep.subr.bf16.mxu0 0
        %365 = vmatpush1.bf16.xpose.msra.mxu0 0
        %366 = vmatprep.subr.bf16.mxu0 0
        %367 = vmatpush1.bf16.xpose.msra.mxu0 0
        %368 = vmatprep.subr.bf16.mxu0 0
        %369 = vmatpush1.bf16.xpose.msra.mxu0 0
        %370 = vmatprep.subr.bf16.mxu0 0
        %371 = vmatpush1.bf16.xpose.msra.mxu0 0
        %372 = vmatprep.subr.bf16.mxu0 0
        %373 = vmatpush1.bf16.xpose.msra.mxu0 0
        %374 = vmatprep.subr.bf16.mxu0 0
        %375 = vmatpush1.bf16.xpose.msra.mxu0 0
        %376 = vmatprep.subr.bf16.mxu0 0
        %377 = vmatpush1.bf16.xpose.msra.mxu0 %v360
        %378 = vmatprep.subr.bf16.mxu0 0
        %379 = vmatpush2.bf16.xpose.msra.mxu0 0
        %380 = vmatprep.subr.bf16.mxu0 0
        %381 = vmatpush2.bf16.xpose.msra.mxu0 0
        %382 = vmatprep.subr.bf16.mxu0 0
        %383 = vmatpush2.bf16.xpose.msra.mxu0 0
        %384 = vmatprep.subr.bf16.mxu0 0
        %385 = vmatpush2.bf16.xpose.msra.mxu0 0
        %386 = vmatprep.subr.bf16.mxu0 0
        %387 = vmatpush2.bf16.xpose.msra.mxu0 0
        %388 = vmatprep.subr.bf16.mxu0 0
        %389 = vmatpush2.bf16.xpose.msra.mxu0 0
        %390 = vmatprep.subr.bf16.mxu0 0
        %391 = vmatpush2.bf16.xpose.msra.mxu0 0
        %392 = vmatprep.subr.bf16.mxu0 0
        %393 = vmatpush2.bf16.xpose.msra.mxu0 0
        %394 = vmatprep.mubr.bf16.mxu0 0
        %395 = vmatmul.mubr.bf16.gmra.mxu0 %v357
        %v396 = vpop.f32.mrf.mxu0
        %v397 = vadd.f32 0.0, %v396
        %v398 = vpop.f32.mrf.mxu0
        %v399 = vpop.f32.mrf.mxu0
        %v400 = vadd.f32 0.0, %v399
        %v401 = vpop.f32.mrf.mxu0
        %402 = vdwg.mxu0
        %v403 = vlaneseq
        %v404 = vand.u32 %v403, 127
        %405 = vset.pattern.permute.xlu0 1
        %406 = vperm.xlu0 %405, %v328
        %v407 = vpop.permute.xlu0 %406
        %v408 = vlaneseq
        %v409 = vshrl.u32 %v408, 7
        %v410 = vsub.s32 0, %v409
        %v411 = vrot.slane %v407, %v410
        %vm412 = vcmp.lt.s32.totalorder %v404, %v411
        %v413 = vsel %vm412, 1, 0
        %vm414 = vcmp.eq.s32.totalorder %v413, 1
        %v415 = vsel %vm414, %v397, -inf
        %v416 = vsel %vm414, %v400, -inf
        %v417 = vlaneseq
        %v418 = vshrl.u32 %v417, 7
        %v419 = vadd.s32 %v418, 8
        %v420 = vlaneseq
        %v421 = vshrl.u32 %v420, 7
        %v422 = vsub.s32 0, %v421
        %v423 = vrot.slane %v328, %v422
        %vm424 = vcmp.lt.s32.totalorder %v418, %v423
        %vm425 = vcmp.lt.s32.totalorder %v419, %v423
        %vm426 = vcmask 64512
        %v427 = vsel %vm426, %v415, -inf
        %428 = vmax.xlane.f32.xlu0 %v427
        %v429 = vpop.xlane.xlu0 %428
        %v430 = vsel %vm426, %v416, -inf
        %431 = vmax.xlane.f32.xlu0 %v430
        %v432 = vpop.xlane.xlu0 %431
        %vm433 = vcmp.eq.f32.partialorder %v429, -inf
        %vm434 = vcmp.eq.f32.partialorder %v432, -inf
        %v435 = vsel %vm433, 0.0, %v429
        %v436 = vsel %vm434, 0.0, %v432
        %v437 = vsub.f32 %v415, %v435
        %v438 = vsub.f32 %v416, %v436
        %v439 = vmul.f32 %v437, 1.442695
        %v440 = vpow.pop %v439
        %v441 = vmul.f32 %v438, 1.442695
        %v442 = vpow.pop %v441
        %v443 = vsel %vm426, %v440, 0.0
        %444 = vadd.xlane.f32.xlu0 %v443
        %v445 = vpop.xlane.xlu0 %444
        %v446 = vsel %vm426, %v442, 0.0
        %447 = vadd.xlane.f32.xlu0 %v446
        %v448 = vpop.xlane.xlu0 %447
        %vm449 = vcmp.gt.f32.partialorder %v445, 0.0
        %vm450 = vcmp.gt.f32.partialorder %v448, 0.0
        %vm451 = vmand %vm424, %vm449
        %vm452 = vmand %vm425, %vm450
        %v453 = vrcp.pop %v445
        %v454 = vmul.f32 1.0, %v453
        %v455 = vrcp.pop %v448
        %v456 = vmul.f32 1.0, %v455
        %v457 = vsel %vm451, %v454, 0.0
        %v458 = vsel %vm452, %v456, 0.0
        %v459 = vpack.c.bf16 %v442, %v440
        %v461 = vsel %vm426, %v459, 0
        %vm463 = vcmask 1043456
        %v464 = vsel %vm463, %v342, 0
        %466 = vmatprep.subr.bf16.mxu0 0
        %467 = vmatpush1.bf16.msra.mxu0 0
        %468 = vmatprep.subr.bf16.mxu0 0
        %469 = vmatpush1.bf16.msra.mxu0 0
        %470 = vmatprep.subr.bf16.mxu0 0
        %471 = vmatpush1.bf16.msra.mxu0 0
        %472 = vmatprep.subr.bf16.mxu0 0
        %473 = vmatpush1.bf16.msra.mxu0 0
        %474 = vmatprep.subr.bf16.mxu0 0
        %475 = vmatpush1.bf16.msra.mxu0 0
        %476 = vmatprep.subr.bf16.mxu0 0
        %477 = vmatpush1.bf16.msra.mxu0 0
        %478 = vmatprep.subr.bf16.mxu0 0
        %479 = vmatpush1.bf16.msra.mxu0 0
        %480 = vmatprep.subr.bf16.mxu0 0
        %481 = vmatpush1.bf16.msra.mxu0 %v464
        %482 = vmatprep.subr.bf16.mxu0 0
        %483 = vmatpush2.bf16.msra.mxu0 0
        %484 = vmatprep.subr.bf16.mxu0 0
        %485 = vmatpush2.bf16.msra.mxu0 0
        %486 = vmatprep.subr.bf16.mxu0 0
        %487 = vmatpush2.bf16.msra.mxu0 0
        %488 = vmatprep.subr.bf16.mxu0 0
        %489 = vmatpush2.bf16.msra.mxu0 0
        %490 = vmatprep.subr.bf16.mxu0 0
        %491 = vmatpush2.bf16.msra.mxu0 0
        %492 = vmatprep.subr.bf16.mxu0 0
        %493 = vmatpush2.bf16.msra.mxu0 0
        %494 = vmatprep.subr.bf16.mxu0 0
        %495 = vmatpush2.bf16.msra.mxu0 0
        %496 = vmatprep.subr.bf16.mxu0 0
        %497 = vmatpush2.bf16.msra.mxu0 0
        %498 = vmatprep.mubr.bf16.mxu0 0
        %499 = vmatmul.mubr.bf16.gmra.mxu0 %v461
        %v500 = vpop.f32.mrf.mxu0
        %v501 = vadd.f32 0.0, %v500
        %v502 = vpop.f32.mrf.mxu0
        %v503 = vpop.f32.mrf.mxu0
        %v504 = vadd.f32 0.0, %v503
        %v505 = vpop.f32.mrf.mxu0
        %506 = vdwg.mxu0
        %508 = vset.pattern.permute.xlu0 0
        %509 = vperm.xlu0 %508, %v457
        %v510 = vpop.permute.xlu0 %509
        %513 = vset.pattern.permute.xlu0 0
        %514 = vperm.xlu0 %513, %v458
        %v515 = vpop.permute.xlu0 %514
        %v517 = vmul.f32 %v501, %v510
        %v518 = vmul.f32 %v504, %v515
        %519 = vst.msk [vmem:[%s314] sm:$0xff] %vm335, %v517
        %520 = vst.msk [vmem:[%s314 + $0x8] sm:$0xff] %vm335, %v518
        %v521 = vadd.f32 %v429, %v338
        %v522 = vadd.f32 %v432, %v341
        %v523 = vsel %vm424, %v521, -inf
        %v524 = vsel %vm425, %v522, -inf
        %vm525 = vcmask 7168
        %v526 = vsel %vm525, %v523, -inf
        %v527 = vsel %vm525, %v524, -inf
        %v528 = vmax.f32 %v526, %v527
        %v529 = vrot.slane %v528, 4
        %v530 = vmax.f32 %v528, %v529
        %v531 = vrot.slane %v530, 2
        %v532 = vmax.f32 %v530, %v531
        %v533 = vrot.slane %v532, 1
        %v534 = vmax.f32 %v532, %v533
        %vm535 = vcmp.eq.f32.partialorder %v534, -inf
        %v536 = vsel %vm535, 0.0, %v534
        %v537 = vsub.f32 %v523, %v536
        %v538 = vsub.f32 %v524, %v536
        %v539 = vmul.f32 %v537, 1.442695
        %v540 = vpow.pop %v539
        %v541 = vmul.f32 %v538, 1.442695
        %v542 = vpow.pop %v541
        %v543 = vsel %vm525, %v540, 0.0
        %v544 = vsel %vm525, %v542, 0.0
        %v545 = vadd.f32 %v543, %v544
        %v546 = vrot.slane %v545, 4
        %v547 = vadd.f32 %v545, %v546
        %v548 = vrot.slane %v547, 2
        %v549 = vadd.f32 %v547, %v548
        %v550 = vrot.slane %v549, 1
        %v551 = vadd.f32 %v549, %v550
        %553 = vset.pattern.permute.xlu0 0
        %554 = vperm.xlu0 %553, %v540
        %v555 = vpop.permute.xlu0 %554
        %558 = vset.pattern.permute.xlu0 0
        %559 = vperm.xlu0 %558, %v542
        %v560 = vpop.permute.xlu0 %559
        %v562 = vmul.f32 %v555, %v322
        %v563 = vmul.f32 %v560, %v323
        %v564 = vsel %vm335, %v562, 0.0
        %v565 = vsel %vm335, %v563, 0.0
        %v566 = vadd.f32 %v564, %v565
        %v567 = vrot.slane %v566, 4
        %v568 = vadd.f32 %v566, %v567
        %v569 = vrot.slane %v568, 2
        %v570 = vadd.f32 %v568, %v569
        %v571 = vrot.slane %v570, 1
        %v572 = vadd.f32 %v570, %v571
        %574 = vset.pattern.permute.xlu0 0
        %575 = vperm.xlu0 %574, %v551
        %v576 = vpop.permute.xlu0 %575
        %v578 = vrcp.pop %v576
        %v579 = vmul.f32 %v572, %v578
        %vm580 = vcmask 253952
        %581 = vst.msk [vmem:[%s320] sm:$0x1] %vm580, %v579
        %s582 = sand.u32 %s136, 1
        %s583 = scalar_lea.sflag [#allocation4], %s582
        %s584 = sand.u32 %s136, 1
        %s585 = smul.addr %s584, 16
        %s586 = scalar_lea.vmem [#allocation8], %s585
        %s587 = sand.u32 %s162, 1
        %s588 = scalar_lea.sflag [#allocation10], %s587
        %s589 = sand.u32 %s162, 1
        %s590 = scalar_lea.vmem [#allocation9], %s589
        // Predicated region
        $region49: #{tpu_custom_call.1} parent=35 // pred_check
          %p591 = pneg %p146
        $region50: #{tpu_custom_call.1} parent=35 // pred_check_branch
          %593 = sbr.rel (%p591) target = $region52
        $region51: #{tpu_custom_call.1} parent=35 // pred_region
          %s595 = ssub.s32 256, 256
          %596 = vsyncadd %s583, %s595
          %s597 = smul.addr %s29, 2
          %s598 = smul.addr %s597, 128
          %s599 = scalar_lea.hbm %s4, %s598
          %s600 = sshll.u32 %s586, 4
          %s601 = int_to_ptr.vmem [resolvable:$true] %s600
          %606 = dma.vmem_to_hbm [thread:$0]  %s601, 256, %s599, %s583, 128, 128, 8
        $region52: #{tpu_custom_call.1} parent=35 // pred_fallthru
          _
        // Predicated region
        $region53: #{tpu_custom_call.1} parent=35 // pred_check
          %p607 = pneg %p172
        $region54: #{tpu_custom_call.1} parent=35 // pred_check_branch
          %609 = sbr.rel (%p607) target = $region56
        $region55: #{tpu_custom_call.1} parent=35 // pred_region
          %s611 = ssub.s32 16, 16
          %612 = vsyncadd %s588, %s611
          %s613 = smul.addr %s29, 16
          %s614 = scalar_lea.hbm %s5, %s613
          %s616 = sshll.u32 %s590, 4
          %s617 = int_to_ptr.vmem [resolvable:$true] %s616
          %619 = dma.vmem_to_hbm [thread:$0]  %s617, 16, %s614, %s588
        $region56: #{tpu_custom_call.1} parent=35 // pred_fallthru
          _
      $region36: #{tpu_custom_call.1} parent=5 // pred_fallthru
        _
      %p620 = scmp.le.s32.totalorder 2, %s24
      // Predicated region
      $region57: #{tpu_custom_call.1} parent=5 // pred_check
        %p621 = pneg %p620
      $region58: #{tpu_custom_call.1} parent=5 // pred_check_branch
        %623 = sbr.rel (%p621) target = $region60
      $region59: #{tpu_custom_call.1} parent=5 // pred_region
        %s624 = ssub.s32 %s24, 2
        // Predicated region
        $region61: #{tpu_custom_call.1} parent=59 // pred_check
          %p625 = pneg %p152
        $region62: #{tpu_custom_call.1} parent=59 // pred_check_branch
          %627 = sbr.rel (%p625) target = $region64
        $region63: #{tpu_custom_call.1} parent=59 // pred_region
          %s628 = sand.u32 %s137, 1
          %s629 = scalar_lea.sflag [#allocation4], %s628
          %s630 = sand.u32 %s137, 1
          %s631 = smul.addr %s630, 16
          %s632 = scalar_lea.vmem [#allocation8], %s631
          %633 = dma.done %s629, 256
        $region64: #{tpu_custom_call.1} parent=59 // pred_fallthru
          _
        // Predicated region
        $region65: #{tpu_custom_call.1} parent=59 // pred_check
          %p634 = pneg %p178
        $region66: #{tpu_custom_call.1} parent=59 // pred_check_branch
          %636 = sbr.rel (%p634) target = $region68
        $region67: #{tpu_custom_call.1} parent=59 // pred_region
          %s637 = sand.u32 %s163, 1
          %s638 = scalar_lea.sflag [#allocation10], %s637
          %s639 = sand.u32 %s163, 1
          %s640 = scalar_lea.vmem [#allocation9], %s639
          %641 = dma.done %s638, 16
        $region68: #{tpu_custom_call.1} parent=59 // pred_fallthru
          _
      $region60: #{tpu_custom_call.1} parent=5 // pred_fallthru
        _
    $region6: #{tpu_custom_call.1} parent=1 // loop_footer
      %s28 = sadd.s32 1, %s24
    $region7: #{tpu_custom_call.1} parent=1 // loop_footer_branch
      %23 = sbr.rel target = $region3
    $region8: #{tpu_custom_call.1} parent=1 // loop_exit
      _
    %642 = vsyncpa [#allocation3], 1
    %s643 = scalar_lea.sflag [#allocation3], 1
    %644 = vsyncpa %s643, 1
    %645 = vsyncpa [#allocation6], 1
    %s646 = scalar_lea.sflag [#allocation6], 1
    %647 = vsyncpa %s646, 1
    %648 = vsyncpa [#allocation4], 1
    %s649 = scalar_lea.sflag [#allocation4], 1
    %650 = vsyncpa %s649, 1
    %651 = vsyncpa [#allocation10], 1
    %s652 = scalar_lea.sflag [#allocation10], 1
    %653 = vsyncpa %s652, 1

</llo_original>
